<compile_context>
chip_gen: v7x
topology: tpu7x:2x2x1
jax: 0.10.0
libtpu: 0.0.40
codegen_flags: <defaults>
</compile_context>

<pallas_src>
import functools

import jax
import jax.numpy as jnp
from jax.experimental import pallas as pl
from jax.experimental.pallas import tpu as pltpu


def _round_up(x: int, m: int) -> int:
    return (x + m - 1) // m * m


def _pad_and_tiles(n: int):
    """Padded node count and (row, k) tile sizes.

    Tiles sized so double-buffered bf16 A tiles + XW tiles + the f32 accumulator stay
    a few MiB -> fits v7x's 64 MiB VMEM (default 32 MiB scoped limit) with 2-deep
    pipelining.  On v6e (128 MiB VMEM) the caps could be raised further.
    """
    row_cap, k_cap = 256, 512
    if n <= k_cap:
        n_p = _round_up(n, 128)
        tile_k = n_p
        tile_n = row_cap if n_p % row_cap == 0 else 128
        tile_n = min(tile_n, n_p)
    else:
        n_p = _round_up(n, k_cap)          # divisible by both caps
        tile_n, tile_k = row_cap, k_cap
    return n_p, tile_n, tile_k


# ----------------------------- pass 1: feature transform -----------------------------
def _xw_kernel(x_ref, isd_ref, w_ref, xw_ref):
    # (D_src^{-1/2} X) W — src normalization applied BEFORE the matmul, result stored
    # in bf16 so the aggregation matmul feeds the MXU natively (f32 accumulation).
    xn = (x_ref[...] * isd_ref[...]).astype(jnp.bfloat16)
    xw_ref[...] = jnp.dot(xn, w_ref[...],
                          preferred_element_type=jnp.float32).astype(jnp.bfloat16)


# ----------------------------- pass 2: aggregation (A @ XW) --------------------------
def _agg_kernel(a_ref, xw_ref, isd_ref, h_ref, ssum_ref, ssq_ref, acc_ref):
    k = pl.program_id(1)

    @pl.when(k == 0)
    def _():
        acc_ref[...] = jnp.zeros_like(acc_ref)

    # bf16 A tile @ bf16 XW tile -> f32 accumulator (pure MXU inner loop).
    acc_ref[...] += jnp.dot(a_ref[...], xw_ref[...],
                            preferred_element_type=jnp.float32)

    @pl.when(k == pl.num_programs(1) - 1)
    def _():
        h = acc_ref[...] * isd_ref[...]          # dst-side D^{-1/2}
        # Conv bias intentionally omitted: training-mode BatchNorm's mean subtraction
        # cancels any per-column bias exactly.
        h_ref[...] = h
        # Per-row-tile BN partial statistics (padded rows are all-zero -> contribute 0).
        ssum_ref[...] = jnp.sum(h, axis=0, keepdims=True)[None]
        ssq_ref[...] = jnp.sum(h * h, axis=0, keepdims=True)[None]


# ------------------------ pass 3: BatchNorm + ReLU + residual ------------------------
def _bn_relu_res_kernel(h_ref, x_ref, ssum_ref, ssq_ref, gamma_ref, beta_ref, o_ref,
                        *, n_nodes, eps):
    inv_n = 1.0 / n_nodes
    mean = jnp.sum(ssum_ref[...], axis=0) * inv_n           # (1, Dp) global stats
    ex2 = jnp.sum(ssq_ref[...], axis=0) * inv_n
    var = jnp.maximum(ex2 - mean * mean, 0.0)
    scale = gamma_ref[...] * jax.lax.rsqrt(var + eps)        # fused BN affine
    shift = beta_ref[...] - mean * scale
    h = h_ref[...] * scale + shift                           # single FMA-style pass
    o_ref[...] = (x_ref[...] + jnp.maximum(h, 0.0)).astype(o_ref.dtype)


# ------------------------------------- wrapper ---------------------------------------
def gcn_layer(adj, x, weight, bias, gamma, beta, *, eps=1e-5, residual=True):
    """adj: (N, N), x: (N, Din), weight: (Din, Dout), gamma/beta: (Dout,) or (1, Dout)."""
    N, Din = x.shape
    Dout = weight.shape[1]
    if Din != Dout:
        residual = False                      # matches the PyTorch module
    del bias                                  # cancelled exactly by training-mode BN

    f32, bf16 = jnp.float32, jnp.bfloat16
    N_p, tile_n, tile_k = _pad_and_tiles(N)
    Din_p = _round_up(Din, 128)
    Dp = _round_up(Dout, 128)
    n_i, n_k = N_p // tile_n, N_p // tile_k

    # degree norms from the un-padded adjacency (DGL clamps degrees to >= 1).
    a32 = adj.astype(f32)
    isd_dst = jax.lax.rsqrt(jnp.maximum(a32.sum(axis=1), 1.0)).reshape(N, 1)  # in-deg
    isd_src = jax.lax.rsqrt(jnp.maximum(a32.sum(axis=0), 1.0)).reshape(N, 1)  # out-deg

    # zero padding: padded A rows/cols and feature cols contribute nothing.
    a_p = jnp.zeros((N_p, N_p), bf16).at[:N, :N].set(adj.astype(bf16))
    x_p = jnp.zeros((N_p, Din_p), f32).at[:N, :Din].set(x.astype(f32))
    w_p = jnp.zeros((Din_p, Dp), bf16).at[:Din, :Dout].set(weight.astype(bf16))
    gm_p = jnp.zeros((1, Dp), f32).at[:, :Dout].set(jnp.reshape(gamma, (1, Dout)).astype(f32))
    bt_p = jnp.zeros((1, Dp), f32).at[:, :Dout].set(jnp.reshape(beta, (1, Dout)).astype(f32))
    isd_src_p = jnp.zeros((N_p, 1), f32).at[:N].set(isd_src)
    isd_dst_p = jnp.zeros((N_p, 1), f32).at[:N].set(isd_dst)
    x_res = x_p if residual else jnp.zeros((N_p, Dp), f32)

    # ---- pass 1: XW = (D_src^{-1/2} X) W, bf16, row-tiled --------------------------
    xw = pl.pallas_call(
        _xw_kernel,
        out_shape=jax.ShapeDtypeStruct((N_p, Dp), bf16),
        grid=(n_i,),
        in_specs=[pl.BlockSpec((tile_n, Din_p), lambda i: (i, 0)),
                  pl.BlockSpec((tile_n, 1), lambda i: (i, 0)),
                  pl.BlockSpec((Din_p, Dp), lambda i: (0, 0))],
        out_specs=pl.BlockSpec((tile_n, Dp), lambda i: (i, 0)),
        compiler_params=pltpu.CompilerParams(dimension_semantics=("parallel",)),
    )(x_p, isd_src_p, w_p)

    # ---- pass 2: H = D_dst^{-1/2} (A @ XW) + BN partial stats ----------------------
    h, ssum, ssq = pl.pallas_call(
        _agg_kernel,
        out_shape=(jax.ShapeDtypeStruct((N_p, Dp), f32),
                   jax.ShapeDtypeStruct((n_i, 1, Dp), f32),
                   jax.ShapeDtypeStruct((n_i, 1, Dp), f32)),
        grid=(n_i, n_k),
        in_specs=[pl.BlockSpec((tile_n, tile_k), lambda i, k: (i, k)),
                  pl.BlockSpec((tile_k, Dp), lambda i, k: (k, 0)),
                  pl.BlockSpec((tile_n, 1), lambda i, k: (i, 0))],
        out_specs=(pl.BlockSpec((tile_n, Dp), lambda i, k: (i, 0)),
                   pl.BlockSpec((1, 1, Dp), lambda i, k: (i, 0, 0)),
                   pl.BlockSpec((1, 1, Dp), lambda i, k: (i, 0, 0))),
        scratch_shapes=[pltpu.VMEM((tile_n, Dp), f32)],
        compiler_params=pltpu.CompilerParams(
            dimension_semantics=("parallel", "arbitrary")),
    )(a_p, xw, isd_dst_p)

    # ---- pass 3: global BN + ReLU + residual, row-tiled ----------------------------
    out = pl.pallas_call(
        functools.partial(_bn_relu_res_kernel, n_nodes=float(N), eps=eps),
        out_shape=jax.ShapeDtypeStruct((N_p, Dp), f32),
        grid=(n_i,),
        in_specs=[pl.BlockSpec((tile_n, Dp), lambda i: (i, 0)),
                  pl.BlockSpec((tile_n, Dp), lambda i: (i, 0)),
                  pl.BlockSpec((n_i, 1, Dp), lambda i: (0, 0, 0)),
                  pl.BlockSpec((n_i, 1, Dp), lambda i: (0, 0, 0)),
                  pl.BlockSpec((1, Dp), lambda i: (0, 0)),
                  pl.BlockSpec((1, Dp), lambda i: (0, 0))],
        out_specs=pl.BlockSpec((tile_n, Dp), lambda i: (i, 0)),
        compiler_params=pltpu.CompilerParams(dimension_semantics=("parallel",)),
    )(h, x_res, ssum, ssq, gm_p, bt_p)

    return out[:N, :Dout]


if __name__ == "__main__":
    # small, module-consistent shapes: N nodes, in_dim == out_dim (so residual=True)
    N, D_IN, D_OUT = 64, 32, 32

    key = jax.random.PRNGKey(0)
    k_x, k_w, k_a = jax.random.split(key, 3)

    x = jax.random.normal(k_x, (N, D_IN), dtype=jnp.float32)

    # deterministic symmetric adjacency with self-loops
    a_rand = jax.random.uniform(k_a, (N, N), dtype=jnp.float32)
    a_sym = (a_rand + a_rand.T) * 0.5
    adj = (a_sym > 0.8).astype(jnp.float32)
    adj = jnp.maximum(adj, jnp.eye(N, dtype=jnp.float32))

    limit = (6.0 / (D_IN + D_OUT)) ** 0.5
    weight = jax.random.uniform(k_w, (D_IN, D_OUT), dtype=jnp.float32,
                                minval=-limit, maxval=limit)
    bias = jnp.zeros((1, D_OUT), jnp.float32)
    gamma = jnp.ones((1, D_OUT), jnp.float32)
    beta = jnp.zeros((1, D_OUT), jnp.float32)

    out = jax.block_until_ready(gcn_layer(adj, x, weight, bias, gamma, beta))

    # ---- sanity checks against pure-JAX references ----------------------------------
    def reference(cast):
        isd_dst = jax.lax.rsqrt(jnp.maximum(adj.sum(axis=1, keepdims=True), 1.0))
        isd_src = jax.lax.rsqrt(jnp.maximum(adj.sum(axis=0, keepdims=True), 1.0)).T
        xw = jnp.dot(cast(x * isd_src), cast(weight),
                     preferred_element_type=jnp.float32)
        h = jnp.dot(cast(adj), cast(xw),
                    preferred_element_type=jnp.float32) * isd_dst + bias
        m = h.mean(axis=0, keepdims=True)
        v = (h * h).mean(axis=0, keepdims=True) - m * m
        h = (h - m) * jax.lax.rsqrt(v + 1e-5) * gamma + beta
        return x + jnp.maximum(h, 0.0)

    # reference at the kernel's MXU precision (bf16 inputs, f32 accumulation): tight
    ref_matched = reference(lambda t: t.astype(jnp.bfloat16))
    # exact module math in f32: looser tolerance covers the deliberate bf16 MXU inputs
    ref_f32 = reference(lambda t: t.astype(jnp.float32))

    assert jnp.allclose(out, ref_matched, atol=2e-3, rtol=2e-3), "mismatch (matched ref)"
    assert jnp.allclose(out, ref_f32, atol=1e-1, rtol=1e-1), "mismatch (f32 module ref)"

    print("KERNEL_OK")
</pallas_src>

<mosaic_0001>
module attributes {stable_mosaic.version = 11 : i64} {
  func.func @_xw_kernel(%arg0: i32, %arg1: memref<128x128xf32, #tpu.memory_space<vmem>>, %arg2: memref<128x1xf32, #tpu.memory_space<vmem>>, %arg3: memref<128x128xbf16, #tpu.memory_space<vmem>>, %arg4: memref<128x128xbf16, #tpu.memory_space<vmem>>) attributes {dimension_semantics = [#tpu.dimension_semantics<parallel>], iteration_bounds = array<i64: 1>, scalar_prefetch = 0 : i64, scratch_operands = 0 : i64, tpu.core_type = #tpu.core_type<tc>, window_params = [{transform_indices = @transform_0, window_bounds = array<i64: 128, 128>}, {transform_indices = @transform_1, window_bounds = array<i64: 128, 1>}, {pipeline_mode = #tpu.pipeline_mode<synchronous>, transform_indices = @transform_2, window_bounds = array<i64: 128, 128>}, {transform_indices = @transform_3, window_bounds = array<i64: 128, 128>}]} {
    %c0 = arith.constant 0 : index
    %c0_0 = arith.constant 0 : index
    %0 = vector.load %arg1[%c0, %c0_0] : memref<128x128xf32, #tpu.memory_space<vmem>>, vector<128x128xf32>
    %c0_1 = arith.constant 0 : index
    %c0_2 = arith.constant 0 : index
    %1 = vector.load %arg2[%c0_1, %c0_2] : memref<128x1xf32, #tpu.memory_space<vmem>>, vector<128x1xf32>
    %2 = vector.broadcast %1 : vector<128x1xf32> to vector<128x128xf32>
    %3 = arith.mulf %0, %2 : vector<128x128xf32>
    %4 = arith.truncf %3 : vector<128x128xf32> to vector<128x128xbf16>
    %c0_3 = arith.constant 0 : index
    %c0_4 = arith.constant 0 : index
    %5 = vector.load %arg3[%c0_3, %c0_4] : memref<128x128xbf16, #tpu.memory_space<vmem>>, vector<128x128xbf16>
    %cst = arith.constant dense<0.000000e+00> : vector<128x128xf32>
    %6 = tpu.matmul %4, %5, %cst {dimension_numbers = #tpu.dot_dimension_numbers<[1], [0], [0], [1], [0, 0, 1, 1], [], []>} : vector<128x128xbf16>, vector<128x128xbf16>, vector<128x128xf32> -> vector<128x128xf32>
    %7 = arith.truncf %6 : vector<128x128xf32> to vector<128x128xbf16>
    %c0_5 = arith.constant 0 : index
    %c0_6 = arith.constant 0 : index
    %8 = vector.load %arg4[%c0_5, %c0_6] : memref<128x128xbf16, #tpu.memory_space<vmem>>, vector<128x128xbf16>
    tpu.vector_store %arg4[%c0_5, %c0_6], %7 {strides = array<i32>} : memref<128x128xbf16, #tpu.memory_space<vmem>>, vector<128x128xbf16>,
    return
  }
  func.func @transform_0(%arg0: i32) -> (i32, i32) {
    %c0_i32 = arith.constant 0 : i32
    %c0_i32_0 = arith.constant 0 : i32
    return %arg0, %c0_i32 : i32, i32
  }
  func.func @transform_1(%arg0: i32) -> (i32, i32) {
    %c0_i32 = arith.constant 0 : i32
    %c0_i32_0 = arith.constant 0 : i32
    return %arg0, %c0_i32 : i32, i32
  }
  func.func @transform_2(%arg0: i32) -> (i32, i32) {
    %c0_i32 = arith.constant 0 : i32
    %c0_i32_0 = arith.constant 0 : i32
    %c0_i32_1 = arith.constant 0 : i32
    return %c0_i32, %c0_i32_0 : i32, i32
  }
  func.func @transform_3(%arg0: i32) -> (i32, i32) {
    %c0_i32 = arith.constant 0 : i32
    %c0_i32_0 = arith.constant 0 : i32
    return %arg0, %c0_i32 : i32, i32
  }
}

</mosaic_0001>

<llo_original>
// kernel: tpu_custom_call.1
$region0: #{tpu_custom_call.1}
  #allocation0 [shape = 'u32[]', space=smem, size = 0x4, offset = 0x4, fixed_abs, tag = 'smem constant byte address 0x4 - core index']
  #allocation1 [shape = 'u32[144,128]{1,0:T(1,128)}', space=vmem, size = 0x12000, scoped, tag = 'internal scratch']
  %s0 = inlined_call_operand.vmem [shape: f32[128,128], index: 0, kind: input, shape index: {}]
  %s1 = inlined_call_operand.vmem [shape: f32[128,1], index: 1, kind: input, shape index: {}]
  %s2 = inlined_call_operand.hbm [shape: bf16[128,128], index: 2, kind: input, shape index: {}]
  %s3 = inlined_call_operand.hbm [shape: bf16[128,128], index: 3, kind: output, shape index: {}]
  %s4 = sld [smem:[#allocation0]]
  $region26: #{tpu_custom_call.1} parent=0
    _
  %s6 = ssub.s32 1, %s4
  %s7 = scalar_select 0, %s6, %s4
  $region1: #{tpu_custom_call.1} parent=0
    #allocation2 [shape = 'u8[32768]{0}', space=vmem, size = 0x8000, scoped, tag = 'input window, operand 2, single buffered']
    #allocation3 [shape = 's32[1]{0}', space=sflag, size = 0x4, scoped, tag = 'scoped memory for tpu_custom_call.1']
    #allocation4 [shape = 's32[1]{0}', space=sflag, size = 0x4, scoped, tag = 'scoped memory for tpu_custom_call.1']
    #allocation5 [shape = 'u8[32768]{0}', space=vmem, size = 0x8000, scoped, tag = 'output window, operand 0, single buffered']
    %8 = vsyncpa [#allocation3], 0
    %9 = vsyncpa [#allocation4], 0
    // Predicated region
    $region2: #{tpu_custom_call.1} parent=1 // pred_check
      _
    $region3: #{tpu_custom_call.1} parent=1 // pred_check_branch
      %11 = sbr.rel (0) target = $region5
    $region4: #{tpu_custom_call.1} parent=1 // pred_region
      _
    $region5: #{tpu_custom_call.1} parent=1 // pred_fallthru
      _
    // Predicated region
    $region6: #{tpu_custom_call.1} parent=1 // pred_check
      _
    $region7: #{tpu_custom_call.1} parent=1 // pred_check_branch
      %13 = sbr.rel (0) target = $region9
    $region8: #{tpu_custom_call.1} parent=1 // pred_region
      _
    $region9: #{tpu_custom_call.1} parent=1 // pred_fallthru
      _
    // Predicated region
    $region10: #{tpu_custom_call.1} parent=1 // pred_check
      _
    $region11: #{tpu_custom_call.1} parent=1 // pred_check_branch
      %15 = sbr.rel (0) target = $region13
    $region12: #{tpu_custom_call.1} parent=1 // pred_region
      %s17 = ssub.s32 1024, 1024
      %18 = vsyncadd [#allocation3], %s17
      %s19 = sshll.u32 [#allocation2], 4
      %s20 = int_to_ptr.vmem [resolvable:$true] %s19
      %25 = dma.hbm_to_vmem [thread:$0]  %s2, 1024, %s20, [#allocation3], 64, 64, 4
    $region13: #{tpu_custom_call.1} parent=1 // pred_fallthru
      _
    // Predicated region
    $region14: #{tpu_custom_call.1} parent=1 // pred_check
      _
    $region15: #{tpu_custom_call.1} parent=1 // pred_check_branch
      %27 = sbr.rel (0) target = $region17
    $region16: #{tpu_custom_call.1} parent=1 // pred_region
      %28 = dma.done [#allocation3], 1024
    $region17: #{tpu_custom_call.1} parent=1 // pred_fallthru
      _
    %v30 = vld [vmem:[%s0] sm:$0xff]
    %v31 = vld [vmem:[%s0 + $0x8] sm:$0xff]
    %v32 = vld [vmem:[%s0 + $0x10] sm:$0xff]
    %v33 = vld [vmem:[%s0 + $0x18] sm:$0xff]
    %v34 = vld [vmem:[%s0 + $0x20] sm:$0xff]
    %v35 = vld [vmem:[%s0 + $0x28] sm:$0xff]
    %v36 = vld [vmem:[%s0 + $0x30] sm:$0xff]
    %v37 = vld [vmem:[%s0 + $0x38] sm:$0xff]
    %v38 = vld [vmem:[%s0 + $0x40] sm:$0xff]
    %v39 = vld [vmem:[%s0 + $0x48] sm:$0xff]
    %v40 = vld [vmem:[%s0 + $0x50] sm:$0xff]
    %v41 = vld [vmem:[%s0 + $0x58] sm:$0xff]
    %v42 = vld [vmem:[%s0 + $0x60] sm:$0xff]
    %v43 = vld [vmem:[%s0 + $0x68] sm:$0xff]
    %v44 = vld [vmem:[%s0 + $0x70] sm:$0xff]
    %v45 = vld [vmem:[%s0 + $0x78] sm:$0xff]
    %v46 = vld [vmem:[%s1] sm:$0xff]
    %v47 = vld [vmem:[%s1 + $0x8] sm:$0xff]
    %v48 = vld [vmem:[%s1 + $0x10] sm:$0xff]
    %v49 = vld [vmem:[%s1 + $0x18] sm:$0xff]
    %v50 = vld [vmem:[%s1 + $0x20] sm:$0xff]
    %v51 = vld [vmem:[%s1 + $0x28] sm:$0xff]
    %v52 = vld [vmem:[%s1 + $0x30] sm:$0xff]
    %v53 = vld [vmem:[%s1 + $0x38] sm:$0xff]
    %v54 = vld [vmem:[%s1 + $0x40] sm:$0xff]
    %v55 = vld [vmem:[%s1 + $0x48] sm:$0xff]
    %v56 = vld [vmem:[%s1 + $0x50] sm:$0xff]
    %v57 = vld [vmem:[%s1 + $0x58] sm:$0xff]
    %v58 = vld [vmem:[%s1 + $0x60] sm:$0xff]
    %v59 = vld [vmem:[%s1 + $0x68] sm:$0xff]
    %v60 = vld [vmem:[%s1 + $0x70] sm:$0xff]
    %v61 = vld [vmem:[%s1 + $0x78] sm:$0xff]
    %63 = vset.pattern.permute.xlu0 0
    %64 = vperm.xlu0 %63, %v46
    %v65 = vpop.permute.xlu0 %64
    %68 = vset.pattern.permute.xlu0 0
    %69 = vperm.xlu0 %68, %v47
    %v70 = vpop.permute.xlu0 %69
    %73 = vset.pattern.permute.xlu0 0
    %74 = vperm.xlu0 %73, %v48
    %v75 = vpop.permute.xlu0 %74
    %78 = vset.pattern.permute.xlu0 0
    %79 = vperm.xlu0 %78, %v49
    %v80 = vpop.permute.xlu0 %79
    %83 = vset.pattern.permute.xlu0 0
    %84 = vperm.xlu0 %83, %v50
    %v85 = vpop.permute.xlu0 %84
    %88 = vset.pattern.permute.xlu0 0
    %89 = vperm.xlu0 %88, %v51
    %v90 = vpop.permute.xlu0 %89
    %93 = vset.pattern.permute.xlu0 0
    %94 = vperm.xlu0 %93, %v52
    %v95 = vpop.permute.xlu0 %94
    %98 = vset.pattern.permute.xlu0 0
    %99 = vperm.xlu0 %98, %v53
    %v100 = vpop.permute.xlu0 %99
    %103 = vset.pattern.permute.xlu0 0
    %104 = vperm.xlu0 %103, %v54
    %v105 = vpop.permute.xlu0 %104
    %108 = vset.pattern.permute.xlu0 0
    %109 = vperm.xlu0 %108, %v55
    %v110 = vpop.permute.xlu0 %109
    %113 = vset.pattern.permute.xlu0 0
    %114 = vperm.xlu0 %113, %v56
    %v115 = vpop.permute.xlu0 %114
    %118 = vset.pattern.permute.xlu0 0
    %119 = vperm.xlu0 %118, %v57
    %v120 = vpop.permute.xlu0 %119
    %123 = vset.pattern.permute.xlu0 0
    %124 = vperm.xlu0 %123, %v58
    %v125 = vpop.permute.xlu0 %124
    %128 = vset.pattern.permute.xlu0 0
    %129 = vperm.xlu0 %128, %v59
    %v130 = vpop.permute.xlu0 %129
    %133 = vset.pattern.permute.xlu0 0
    %134 = vperm.xlu0 %133, %v60
    %v135 = vpop.permute.xlu0 %134
    %138 = vset.pattern.permute.xlu0 0
    %139 = vperm.xlu0 %138, %v61
    %v140 = vpop.permute.xlu0 %139
    %v142 = vmul.f32 %v30, %v65
    %v143 = vmul.f32 %v31, %v70
    %v144 = vmul.f32 %v32, %v75
    %v145 = vmul.f32 %v33, %v80
    %v146 = vmul.f32 %v34, %v85
    %v147 = vmul.f32 %v35, %v90
    %v148 = vmul.f32 %v36, %v95
    %v149 = vmul.f32 %v37, %v100
    %v150 = vmul.f32 %v38, %v105
    %v151 = vmul.f32 %v39, %v110
    %v152 = vmul.f32 %v40, %v115
    %v153 = vmul.f32 %v41, %v120
    %v154 = vmul.f32 %v42, %v125
    %v155 = vmul.f32 %v43, %v130
    %v156 = vmul.f32 %v44, %v135
    %v157 = vmul.f32 %v45, %v140
    %v158 = vpack.c.bf16 %v143, %v142
    %v159 = vpack.c.bf16 %v145, %v144
    %v160 = vpack.c.bf16 %v147, %v146
    %v161 = vpack.c.bf16 %v149, %v148
    %v162 = vpack.c.bf16 %v151, %v150
    %v163 = vpack.c.bf16 %v153, %v152
    %v164 = vpack.c.bf16 %v155, %v154
    %v165 = vpack.c.bf16 %v157, %v156
    %v166 = vld [vmem:[#allocation2] sm:$0xf]
    %v167 = vld [vmem:[#allocation2 + $0x4] sm:$0xf]
    %v168 = vld [vmem:[#allocation2 + $0x8] sm:$0xf]
    %v169 = vld [vmem:[#allocation2 + $0xc] sm:$0xf]
    %v170 = vld [vmem:[#allocation2 + $0x10] sm:$0xf]
    %v171 = vld [vmem:[#allocation2 + $0x14] sm:$0xf]
    %v172 = vld [vmem:[#allocation2 + $0x18] sm:$0xf]
    %v173 = vld [vmem:[#allocation2 + $0x1c] sm:$0xf]
    %v174 = vld [vmem:[#allocation2 + $0x20] sm:$0xf]
    %v175 = vld [vmem:[#allocation2 + $0x24] sm:$0xf]
    %v176 = vld [vmem:[#allocation2 + $0x28] sm:$0xf]
    %v177 = vld [vmem:[#allocation2 + $0x2c] sm:$0xf]
    %v178 = vld [vmem:[#allocation2 + $0x30] sm:$0xf]
    %v179 = vld [vmem:[#allocation2 + $0x34] sm:$0xf]
    %v180 = vld [vmem:[#allocation2 + $0x38] sm:$0xf]
    %v181 = vld [vmem:[#allocation2 + $0x3c] sm:$0xf]
    %v198 = vunpack.c.l.b16 %v166
    %v199 = vunpack.c.l.b16 %v167
    %v200 = vunpack.c.l.b16 %v168
    %v201 = vunpack.c.l.b16 %v169
    %v202 = vunpack.c.l.b16 %v170
    %v203 = vunpack.c.l.b16 %v171
    %v204 = vunpack.c.l.b16 %v172
    %v205 = vunpack.c.l.b16 %v173
    %v206 = vunpack.c.l.b16 %v174
    %v207 = vunpack.c.l.b16 %v175
    %v208 = vunpack.c.l.b16 %v176
    %v209 = vunpack.c.l.b16 %v177
    %v210 = vunpack.c.l.b16 %v178
    %v211 = vunpack.c.l.b16 %v179
    %v212 = vunpack.c.l.b16 %v180
    %v213 = vunpack.c.l.b16 %v181
    %v214 = vpack.c.b16 %v199, %v198
    %v215 = vpack.c.b16 %v201, %v200
    %v216 = vpack.c.b16 %v203, %v202
    %v217 = vpack.c.b16 %v205, %v204
    %v218 = vpack.c.b16 %v207, %v206
    %v219 = vpack.c.b16 %v209, %v208
    %v220 = vpack.c.b16 %v211, %v210
    %v221 = vpack.c.b16 %v213, %v212
    %230 = vmatprep.subr.bf16.mxu0 0
    %231 = vmatpush1.bf16.msra.mxu0 %v214
    %232 = vmatprep.subr.bf16.mxu0 0
    %233 = vmatpush1.bf16.msra.mxu0 %v215
    %234 = vmatprep.subr.bf16.mxu0 0
    %235 = vmatpush1.bf16.msra.mxu0 %v216
    %236 = vmatprep.subr.bf16.mxu0 0
    %237 = vmatpush1.bf16.msra.mxu0 %v217
    %238 = vmatprep.subr.bf16.mxu0 0
    %239 = vmatpush1.bf16.msra.mxu0 %v218
    %240 = vmatprep.subr.bf16.mxu0 0
    %241 = vmatpush1.bf16.msra.mxu0 %v219
    %242 = vmatprep.subr.bf16.mxu0 0
    %243 = vmatpush1.bf16.msra.mxu0 %v220
    %244 = vmatprep.subr.bf16.mxu0 0
    %245 = vmatpush1.bf16.msra.mxu0 %v221
    %246 = vmatprep.subr.bf16.mxu0 0
    %247 = vmatpush1.bf16.msra.mxu0 0
    %248 = vmatprep.subr.bf16.mxu0 0
    %249 = vmatpush1.bf16.msra.mxu0 0
    %250 = vmatprep.subr.bf16.mxu0 0
    %251 = vmatpush1.bf16.msra.mxu0 0
    %252 = vmatprep.subr.bf16.mxu0 0
    %253 = vmatpush1.bf16.msra.mxu0 0
    %254 = vmatprep.subr.bf16.mxu0 0
    %255 = vmatpush1.bf16.msra.mxu0 0
    %256 = vmatprep.subr.bf16.mxu0 0
    %257 = vmatpush1.bf16.msra.mxu0 0
    %258 = vmatprep.subr.bf16.mxu0 0
    %259 = vmatpush1.bf16.msra.mxu0 0
    %260 = vmatprep.subr.bf16.mxu0 0
    %261 = vmatpush1.bf16.msra.mxu0 0
    %262 = vmatprep.mubr.bf16.mxu0 0
    %263 = vmatmul.mubr.bf16.gmra.mrb[0].mxu0 %v158
    %v264 = vpop.f32.mrb[0].mxu0
    %v265 = vadd.f32 0.0, %v264
    %v266 = vpop.f32.mrb[0].mxu0
    %v267 = vpop.f32.mrb[0].mxu0
    %v268 = vadd.f32 0.0, %v267
    %v269 = vpop.f32.mrb[0].mxu0
    %270 = vmatprep.mubr.bf16.mxu0 0
    %271 = vmatmul.mubr.bf16.gmra.mrb[0].mxu0 %v159
    %v272 = vpop.f32.mrb[0].mxu0
    %v273 = vadd.f32 0.0, %v272
    %v274 = vpop.f32.mrb[0].mxu0
    %v275 = vpop.f32.mrb[0].mxu0
    %v276 = vadd.f32 0.0, %v275
    %v277 = vpop.f32.mrb[0].mxu0
    %278 = vmatprep.mubr.bf16.mxu0 0
    %279 = vmatmul.mubr.bf16.gmra.mrb[0].mxu0 %v160
    %v280 = vpop.f32.mrb[0].mxu0
    %v281 = vadd.f32 0.0, %v280
    %v282 = vpop.f32.mrb[0].mxu0
    %v283 = vpop.f32.mrb[0].mxu0
    %v284 = vadd.f32 0.0, %v283
    %v285 = vpop.f32.mrb[0].mxu0
    %286 = vmatprep.mubr.bf16.mxu0 0
    %287 = vmatmul.mubr.bf16.gmra.mrb[0].mxu0 %v161
    %v288 = vpop.f32.mrb[0].mxu0
    %v289 = vadd.f32 0.0, %v288
    %v290 = vpop.f32.mrb[0].mxu0
    %v291 = vpop.f32.mrb[0].mxu0
    %v292 = vadd.f32 0.0, %v291
    %v293 = vpop.f32.mrb[0].mxu0
    %294 = vmatprep.mubr.bf16.mxu0 0
    %295 = vmatmul.mubr.bf16.gmra.mrb[0].mxu0 %v162
    %v296 = vpop.f32.mrb[0].mxu0
    %v297 = vadd.f32 0.0, %v296
    %v298 = vpop.f32.mrb[0].mxu0
    %v299 = vpop.f32.mrb[0].mxu0
    %v300 = vadd.f32 0.0, %v299
    %v301 = vpop.f32.mrb[0].mxu0
    %302 = vmatprep.mubr.bf16.mxu0 0
    %303 = vmatmul.mubr.bf16.gmra.mrb[0].mxu0 %v163
    %v304 = vpop.f32.mrb[0].mxu0
    %v305 = vadd.f32 0.0, %v304
    %v306 = vpop.f32.mrb[0].mxu0
    %v307 = vpop.f32.mrb[0].mxu0
    %v308 = vadd.f32 0.0, %v307
    %v309 = vpop.f32.mrb[0].mxu0
    %310 = vmatprep.mubr.bf16.mxu0 0
    %311 = vmatmul.mubr.bf16.gmra.mrb[0].mxu0 %v164
    %v312 = vpop.f32.mrb[0].mxu0
    %v313 = vadd.f32 0.0, %v312
    %v314 = vpop.f32.mrb[0].mxu0
    %v315 = vpop.f32.mrb[0].mxu0
    %v316 = vadd.f32 0.0, %v315
    %v317 = vpop.f32.mrb[0].mxu0
    %318 = vmatprep.mubr.bf16.mxu0 0
    %319 = vmatmul.mubr.bf16.gmra.mrb[0].mxu0 %v165
    %v320 = vpop.f32.mrb[0].mxu0
    %v321 = vadd.f32 0.0, %v320
    %v322 = vpop.f32.mrb[0].mxu0
    %v323 = vpop.f32.mrb[0].mxu0
    %v324 = vadd.f32 0.0, %v323
    %v325 = vpop.f32.mrb[0].mxu0
    %326 = vdwg.mxu0
    %v327 = vpack.c.bf16 %v268, %v265
    %v328 = vpack.c.bf16 %v276, %v273
    %v329 = vpack.c.bf16 %v284, %v281
    %v330 = vpack.c.bf16 %v292, %v289
    %v331 = vpack.c.bf16 %v300, %v297
    %v332 = vpack.c.bf16 %v308, %v305
    %v333 = vpack.c.bf16 %v316, %v313
    %v334 = vpack.c.bf16 %v324, %v321
    %v343 = vunpack.c.l.b16 %v327
    %v344 = vunpack.c.h.b16 %v327
    %v345 = vunpack.c.l.b16 %v328
    %v346 = vunpack.c.h.b16 %v328
    %v347 = vunpack.c.l.b16 %v329
    %v348 = vunpack.c.h.b16 %v329
    %v349 = vunpack.c.l.b16 %v330
    %v350 = vunpack.c.h.b16 %v330
    %v351 = vunpack.c.l.b16 %v331
    %v352 = vunpack.c.h.b16 %v331
    %v353 = vunpack.c.l.b16 %v332
    %v354 = vunpack.c.h.b16 %v332
    %v355 = vunpack.c.l.b16 %v333
    %v356 = vunpack.c.h.b16 %v333
    %v357 = vunpack.c.l.b16 %v334
    %v358 = vunpack.c.h.b16 %v334
    %v359 = vpack.c.b16 %v343, %v343
    %v360 = vpack.c.b16 %v344, %v344
    %v361 = vpack.c.b16 %v345, %v345
    %v362 = vpack.c.b16 %v346, %v346
    %v363 = vpack.c.b16 %v347, %v347
    %v364 = vpack.c.b16 %v348, %v348
    %v365 = vpack.c.b16 %v349, %v349
    %v366 = vpack.c.b16 %v350, %v350
    %v367 = vpack.c.b16 %v351, %v351
    %v368 = vpack.c.b16 %v352, %v352
    %v369 = vpack.c.b16 %v353, %v353
    %v370 = vpack.c.b16 %v354, %v354
    %v371 = vpack.c.b16 %v355, %v355
    %v372 = vpack.c.b16 %v356, %v356
    %v373 = vpack.c.b16 %v357, %v357
    %v374 = vpack.c.b16 %v358, %v358
    %391 = vst [vmem:[#allocation5] sm:$0xf] %v359
    %392 = vst [vmem:[#allocation5 + $0x4] sm:$0xf] %v360
    %393 = vst [vmem:[#allocation5 + $0x8] sm:$0xf] %v361
    %394 = vst [vmem:[#allocation5 + $0xc] sm:$0xf] %v362
    %395 = vst [vmem:[#allocation5 + $0x10] sm:$0xf] %v363
    %396 = vst [vmem:[#allocation5 + $0x14] sm:$0xf] %v364
    %397 = vst [vmem:[#allocation5 + $0x18] sm:$0xf] %v365
    %398 = vst [vmem:[#allocation5 + $0x1c] sm:$0xf] %v366
    %399 = vst [vmem:[#allocation5 + $0x20] sm:$0xf] %v367
    %400 = vst [vmem:[#allocation5 + $0x24] sm:$0xf] %v368
    %401 = vst [vmem:[#allocation5 + $0x28] sm:$0xf] %v369
    %402 = vst [vmem:[#allocation5 + $0x2c] sm:$0xf] %v370
    %403 = vst [vmem:[#allocation5 + $0x30] sm:$0xf] %v371
    %404 = vst [vmem:[#allocation5 + $0x34] sm:$0xf] %v372
    %405 = vst [vmem:[#allocation5 + $0x38] sm:$0xf] %v373
    %406 = vst [vmem:[#allocation5 + $0x3c] sm:$0xf] %v374
    // Predicated region
    $region18: #{tpu_custom_call.1} parent=1 // pred_check
      _
    $region19: #{tpu_custom_call.1} parent=1 // pred_check_branch
      %408 = sbr.rel (0) target = $region21
    $region20: #{tpu_custom_call.1} parent=1 // pred_region
      %s410 = ssub.s32 1024, 1024
      %411 = vsyncadd [#allocation4], %s410
      %s412 = sshll.u32 [#allocation5], 4
      %s413 = int_to_ptr.vmem [resolvable:$true] %s412
      %418 = dma.vmem_to_hbm [thread:$0]  %s413, 1024, %s3, [#allocation4], 64, 64, 4
    $region21: #{tpu_custom_call.1} parent=1 // pred_fallthru
      _
    // Predicated region
    $region22: #{tpu_custom_call.1} parent=1 // pred_check
      _
    $region23: #{tpu_custom_call.1} parent=1 // pred_check_branch
      %420 = sbr.rel (0) target = $region25
    $region24: #{tpu_custom_call.1} parent=1 // pred_region
      %421 = dma.done [#allocation4], 1024
    $region25: #{tpu_custom_call.1} parent=1 // pred_fallthru
      _
    %422 = vsyncpa [#allocation3], 1
    %423 = vsyncpa [#allocation4], 1

</llo_original>
